<compile_context>
chip_gen: v7x
topology: tpu7x:2x2x1
jax: 0.10.0
libtpu: 0.0.40
codegen_flags: <defaults>
</compile_context>

<pallas_src>
import functools

import jax
import jax.numpy as jnp
from jax.experimental import pallas as pl
from jax.experimental.pallas import tpu as pltpu


def _round_up(x, m):
    return ((x + m - 1) // m) * m


def _mlp_kernel(x_ref, w1_ref, b1_ref, w2_ref, b2_ref, w3_ref, b3_ref,
                o_ref, h2_ref):
    """Fused 3-layer MLP with LeakyReLU(0.2).

    Grid: (batch tile i, output-column tile j), j innermost.

    x_ref : (TB, 1)   f32     w1_ref: (1, 64)    f32   b1_ref: (1, 64)  f32
    w2_ref: (64, 256) bf16    b2_ref: (1, 256)   f32
    w3_ref: (256, TN) bf16    b3_ref: (1, TN)    f32
    o_ref : (TB, TN)  f32     h2_ref: (TB, 256)  f32 scratch (persists over j)
    """
    neg = 0.2

    # Layers 1 & 2 only depend on the batch tile -> compute once per i
    # (j == 0) and reuse the VMEM-resident h2 for every output-column tile.
    @pl.when(pl.program_id(1) == 0)
    def _():
        # Linear(1, 64): K == 1, broadcasted multiply on the VPU is cheaper
        # than a degenerate K=1 MXU matmul.
        h1 = x_ref[...] * w1_ref[...] + b1_ref[...]            # (TB, 64)
        h1 = jnp.where(h1 > 0, h1, neg * h1)

        # Linear(64, 256), bf16 operands, f32 accumulate.
        h2 = jnp.dot(h1.astype(jnp.bfloat16), w2_ref[...],
                     preferred_element_type=jnp.float32) + b2_ref[...]
        h2_ref[...] = jnp.where(h2 > 0, h2, neg * h2)           # (TB, 256)

    # Linear(256, TN) for the current output-column tile.
    o_ref[...] = jnp.dot(h2_ref[...].astype(jnp.bfloat16), w3_ref[...],
                         preferred_element_type=jnp.float32) + b3_ref[...]


def single_to_2d_channel(x, params, image_size, *, tb=256, tn=2048):
    """JAX wrapper reproducing SingleTo2DChannel.forward.

    x      : (B,) or (B, 1) float32
    params : dict of w1, b1, w2, b2, w3, b3 (f32, nn.Linear weights transposed)
    returns: (B, 1, image_size, image_size) float32
    """
    if x.ndim == 1:
        x = x[:, None]                                          # unsqueeze(-1)
    B = x.shape[0]
    out_dim = image_size * image_size

    # Tile sizes: batch tile 8-aligned, output tile 128-aligned (lane-dense).
    TB = min(_round_up(max(tb, 8), 8), _round_up(B, 8))
    TN = min(_round_up(max(tn, 128), 128), _round_up(out_dim, 128))
    B_pad = _round_up(B, TB)
    N_pad = _round_up(out_dim, TN)

    x_p = jnp.pad(x.astype(jnp.float32), ((0, B_pad - B), (0, 0)))
    w1 = params["w1"].astype(jnp.float32)
    b1 = params["b1"].reshape(1, -1).astype(jnp.float32)
    w2 = params["w2"].astype(jnp.bfloat16)
    b2 = params["b2"].reshape(1, -1).astype(jnp.float32)
    w3 = jnp.pad(params["w3"], ((0, 0), (0, N_pad - out_dim))).astype(jnp.bfloat16)
    b3 = jnp.pad(params["b3"].reshape(1, -1),
                 ((0, 0), (0, N_pad - out_dim))).astype(jnp.float32)

    grid = (B_pad // TB, N_pad // TN)

    flat = pl.pallas_call(
        _mlp_kernel,
        out_shape=jax.ShapeDtypeStruct((B_pad, N_pad), jnp.float32),
        grid=grid,
        in_specs=[
            pl.BlockSpec((TB, 1), lambda i, j: (i, 0)),     # x: per batch tile
            pl.BlockSpec(w1.shape, lambda i, j: (0, 0)),    # small, resident
            pl.BlockSpec(b1.shape, lambda i, j: (0, 0)),
            pl.BlockSpec(w2.shape, lambda i, j: (0, 0)),
            pl.BlockSpec(b2.shape, lambda i, j: (0, 0)),
            pl.BlockSpec((256, TN), lambda i, j: (0, j)),   # w3 streamed over N
            pl.BlockSpec((1, TN), lambda i, j: (0, j)),     # b3 streamed over N
        ],
        out_specs=pl.BlockSpec((TB, TN), lambda i, j: (i, j)),
        scratch_shapes=[pltpu.VMEM((TB, 256), jnp.float32)],
        compiler_params=pltpu.CompilerParams(
            dimension_semantics=("parallel", "arbitrary"),
            vmem_limit_bytes=32 * 1024 * 1024,
        ),
    )(x_p, w1, b1, w2, b2, w3, b3)

    # Strip padding, then Reshape([1, image_size, image_size]) -> NCHW.
    return flat[:B, :out_dim].reshape(B, 1, image_size, image_size)


def init_params(key, image_size):
    """Deterministic synthetic init (shapes match nn.Linear weights, stored
    transposed so the kernel computes x @ W + b)."""
    out_dim = image_size * image_size
    k1, k2, k3 = jax.random.split(key, 3)
    # Simple scaled-normal init (stands in for init_layers' kaiming init).
    w1 = jax.random.normal(k1, (1, 64), jnp.float32) * (2.0 / 1) ** 0.5
    b1 = jnp.zeros((64,), jnp.float32)
    w2 = jax.random.normal(k2, (64, 256), jnp.float32) * (2.0 / 64) ** 0.5
    b2 = jnp.zeros((256,), jnp.float32)
    w3 = jax.random.normal(k3, (256, out_dim), jnp.float32) * (2.0 / 256) ** 0.5
    b3 = jnp.zeros((out_dim,), jnp.float32)
    return dict(w1=w1, b1=b1, w2=w2, b2=b2, w3=w3, b3=b3)


def _reference(x, params):
    """Pure-JAX reference using the same bf16 weight streaming / f32 accumulate
    as the kernel (so the comparison isolates kernel bugs, not quantization)."""
    if x.ndim == 1:
        x = x[:, None]
    h = x @ params["w1"] + params["b1"]
    h = jnp.where(h > 0, h, 0.2 * h)
    h = jnp.dot(h.astype(jnp.bfloat16), params["w2"].astype(jnp.bfloat16),
                preferred_element_type=jnp.float32) + params["b2"]
    h = jnp.where(h > 0, h, 0.2 * h)
    return jnp.dot(h.astype(jnp.bfloat16), params["w3"].astype(jnp.bfloat16),
                   preferred_element_type=jnp.float32) + params["b3"]


if __name__ == "__main__":
    image_size = 16
    key = jax.random.PRNGKey(0)
    kx, kp, kx2 = jax.random.split(key, 3)
    params = init_params(kp, image_size)

    # --- test 1: default tiles, single grid step (B=8) ------------------
    B = 8
    x = jax.random.normal(kx, (B,), jnp.float32)          # dim==1 path
    out = single_to_2d_channel(x, params, image_size)
    out = jax.block_until_ready(out)
    assert out.shape == (B, 1, image_size, image_size), out.shape
    ref = _reference(x, params).reshape(B, 1, image_size, image_size)
    assert jnp.allclose(out, ref, atol=2e-3, rtol=2e-3), "mismatch (test 1)"

    # --- test 2: multi-tile grid (batch padding + N tiling + h2 reuse) ---
    B2 = 20
    x2 = jax.random.normal(kx2, (B2, 1), jnp.float32)     # column-vector path
    out2 = single_to_2d_channel(x2, params, image_size, tb=8, tn=128)
    out2 = jax.block_until_ready(out2)
    assert out2.shape == (B2, 1, image_size, image_size), out2.shape
    ref2 = _reference(x2, params).reshape(B2, 1, image_size, image_size)
    assert jnp.allclose(out2, ref2, atol=2e-3, rtol=2e-3), "mismatch (test 2)"

    print("KERNEL_OK")
</pallas_src>

<mosaic_0001>
module attributes {stable_mosaic.version = 11 : i64} {
  func.func @_mlp_kernel(%arg0: i32, %arg1: i32, %arg2: memref<8x1xf32, #tpu.memory_space<vmem>>, %arg3: memref<1x64xf32, #tpu.memory_space<vmem>>, %arg4: memref<1x64xf32, #tpu.memory_space<vmem>>, %arg5: memref<64x256xbf16, #tpu.memory_space<vmem>>, %arg6: memref<1x256xf32, #tpu.memory_space<vmem>>, %arg7: memref<256x256xbf16, #tpu.memory_space<vmem>>, %arg8: memref<1x256xf32, #tpu.memory_space<vmem>>, %arg9: memref<8x256xf32, #tpu.memory_space<vmem>>, %arg10: memref<8x256xf32, #tpu.memory_space<vmem>>) attributes {dimension_semantics = [#tpu.dimension_semantics<parallel>, #tpu.dimension_semantics<arbitrary>], iteration_bounds = array<i64: 1, 1>, scalar_prefetch = 0 : i64, scratch_operands = 1 : i64, tpu.core_type = #tpu.core_type<tc>, window_params = [{transform_indices = @transform_0, window_bounds = array<i64: 8, 1>}, {pipeline_mode = #tpu.pipeline_mode<synchronous>, transform_indices = @transform_1, window_bounds = array<i64: 1, 64>}, {pipeline_mode = #tpu.pipeline_mode<synchronous>, transform_indices = @transform_2, window_bounds = array<i64: 1, 64>}, {pipeline_mode = #tpu.pipeline_mode<synchronous>, transform_indices = @transform_3, window_bounds = array<i64: 64, 256>}, {pipeline_mode = #tpu.pipeline_mode<synchronous>, transform_indices = @transform_4, window_bounds = array<i64: 1, 256>}, {transform_indices = @transform_5, window_bounds = array<i64: 256, 256>}, {transform_indices = @transform_6, window_bounds = array<i64: 1, 256>}, {transform_indices = @transform_7, window_bounds = array<i64: 8, 256>}]} {
    %c0_i32 = arith.constant 0 : i32
    %0 = arith.cmpi eq, %arg1, %c0_i32 : i32
    %1 = arith.extui %0 : i1 to i32
    %c0_i32_0 = arith.constant 0 : i32
    %2 = arith.cmpi ne, %1, %c0_i32_0 : i32
    scf.if %2 {
      %c0_8 = arith.constant 0 : index
      %c0_9 = arith.constant 0 : index
      %11 = vector.load %arg2[%c0_8, %c0_9] : memref<8x1xf32, #tpu.memory_space<vmem>>, vector<8x1xf32>
      %c0_10 = arith.constant 0 : index
      %c0_11 = arith.constant 0 : index
      %12 = vector.load %arg3[%c0_10, %c0_11] : memref<1x64xf32, #tpu.memory_space<vmem>>, vector<1x64xf32>
      %13 = vector.broadcast %11 : vector<8x1xf32> to vector<8x64xf32>
      %14 = vector.broadcast %12 : vector<1x64xf32> to vector<8x64xf32>
      %15 = arith.mulf %13, %14 : vector<8x64xf32>
      %c0_12 = arith.constant 0 : index
      %c0_13 = arith.constant 0 : index
      %16 = vector.load %arg4[%c0_12, %c0_13] : memref<1x64xf32, #tpu.memory_space<vmem>>, vector<1x64xf32>
      %17 = vector.broadcast %16 : vector<1x64xf32> to vector<8x64xf32>
      %18 = arith.addf %15, %17 : vector<8x64xf32>
      %cst_14 = arith.constant 0.000000e+00 : f32
      %19 = vector.broadcast %cst_14 : f32 to vector<8x64xf32>
      %20 = arith.cmpf ogt, %18, %19 : vector<8x64xf32>
      %cst_15 = arith.constant 2.000000e-01 : f32
      %21 = vector.broadcast %cst_15 : f32 to vector<8x64xf32>
      %22 = arith.mulf %21, %18 : vector<8x64xf32>
      %23 = arith.select %20, %18, %22 : vector<8x64xi1>, vector<8x64xf32>
      %24 = arith.truncf %23 : vector<8x64xf32> to vector<8x64xbf16>
      %c0_16 = arith.constant 0 : index
      %c0_17 = arith.constant 0 : index
      %25 = vector.load %arg5[%c0_16, %c0_17] : memref<64x256xbf16, #tpu.memory_space<vmem>>, vector<64x256xbf16>
      %cst_18 = arith.constant dense<0.000000e+00> : vector<8x256xf32>
      %26 = tpu.matmul %24, %25, %cst_18 {dimension_numbers = #tpu.dot_dimension_numbers<[1], [0], [0], [1], [0, 0, 1, 1], [], []>} : vector<8x64xbf16>, vector<64x256xbf16>, vector<8x256xf32> -> vector<8x256xf32>
      %c0_19 = arith.constant 0 : index
      %c0_20 = arith.constant 0 : index
      %27 = vector.load %arg6[%c0_19, %c0_20] : memref<1x256xf32, #tpu.memory_space<vmem>>, vector<1x256xf32>
      %28 = vector.broadcast %27 : vector<1x256xf32> to vector<8x256xf32>
      %29 = arith.addf %26, %28 : vector<8x256xf32>
      %cst_21 = arith.constant 0.000000e+00 : f32
      %30 = vector.broadcast %cst_21 : f32 to vector<8x256xf32>
      %31 = arith.cmpf ogt, %29, %30 : vector<8x256xf32>
      %cst_22 = arith.constant 2.000000e-01 : f32
      %32 = vector.broadcast %cst_22 : f32 to vector<8x256xf32>
      %33 = arith.mulf %32, %29 : vector<8x256xf32>
      %34 = arith.select %31, %29, %33 : vector<8x256xi1>, vector<8x256xf32>
      %c0_23 = arith.constant 0 : index
      %c0_24 = arith.constant 0 : index
      %35 = vector.load %arg10[%c0_23, %c0_24] : memref<8x256xf32, #tpu.memory_space<vmem>>, vector<8x256xf32>
      tpu.vector_store %arg10[%c0_23, %c0_24], %34 {strides = array<i32>} : memref<8x256xf32, #tpu.memory_space<vmem>>, vector<8x256xf32>,
    } else {
    }
    %c0 = arith.constant 0 : index
    %c0_1 = arith.constant 0 : index
    %3 = vector.load %arg10[%c0, %c0_1] : memref<8x256xf32, #tpu.memory_space<vmem>>, vector<8x256xf32>
    %4 = arith.truncf %3 : vector<8x256xf32> to vector<8x256xbf16>
    %c0_2 = arith.constant 0 : index
    %c0_3 = arith.constant 0 : index
    %5 = vector.load %arg7[%c0_2, %c0_3] : memref<256x256xbf16, #tpu.memory_space<vmem>>, vector<256x256xbf16>
    %cst = arith.constant dense<0.000000e+00> : vector<8x256xf32>
    %6 = tpu.matmul %4, %5, %cst {dimension_numbers = #tpu.dot_dimension_numbers<[1], [0], [0], [1], [0, 0, 1, 1], [], []>} : vector<8x256xbf16>, vector<256x256xbf16>, vector<8x256xf32> -> vector<8x256xf32>
    %c0_4 = arith.constant 0 : index
    %c0_5 = arith.constant 0 : index
    %7 = vector.load %arg8[%c0_4, %c0_5] : memref<1x256xf32, #tpu.memory_space<vmem>>, vector<1x256xf32>
    %8 = vector.broadcast %7 : vector<1x256xf32> to vector<8x256xf32>
    %9 = arith.addf %6, %8 : vector<8x256xf32>
    %c0_6 = arith.constant 0 : index
    %c0_7 = arith.constant 0 : index
    %10 = vector.load %arg9[%c0_6, %c0_7] : memref<8x256xf32, #tpu.memory_space<vmem>>, vector<8x256xf32>
    tpu.vector_store %arg9[%c0_6, %c0_7], %9 {strides = array<i32>} : memref<8x256xf32, #tpu.memory_space<vmem>>, vector<8x256xf32>,
    return
  }
  func.func @transform_0(%arg0: i32, %arg1: i32) -> (i32, i32) {
    %c0_i32 = arith.constant 0 : i32
    %c0_i32_0 = arith.constant 0 : i32
    return %arg0, %c0_i32 : i32, i32
  }
  func.func @transform_1(%arg0: i32, %arg1: i32) -> (i32, i32) {
    %c0_i32 = arith.constant 0 : i32
    %c0_i32_0 = arith.constant 0 : i32
    %c0_i32_1 = arith.constant 0 : i32
    return %c0_i32, %c0_i32_0 : i32, i32
  }
  func.func @transform_2(%arg0: i32, %arg1: i32) -> (i32, i32) {
    %c0_i32 = arith.constant 0 : i32
    %c0_i32_0 = arith.constant 0 : i32
    %c0_i32_1 = arith.constant 0 : i32
    return %c0_i32, %c0_i32_0 : i32, i32
  }
  func.func @transform_3(%arg0: i32, %arg1: i32) -> (i32, i32) {
    %c0_i32 = arith.constant 0 : i32
    %c0_i32_0 = arith.constant 0 : i32
    %c0_i32_1 = arith.constant 0 : i32
    return %c0_i32, %c0_i32_0 : i32, i32
  }
  func.func @transform_4(%arg0: i32, %arg1: i32) -> (i32, i32) {
    %c0_i32 = arith.constant 0 : i32
    %c0_i32_0 = arith.constant 0 : i32
    %c0_i32_1 = arith.constant 0 : i32
    return %c0_i32, %c0_i32_0 : i32, i32
  }
  func.func @transform_5(%arg0: i32, %arg1: i32) -> (i32, i32) {
    %c0_i32 = arith.constant 0 : i32
    %c0_i32_0 = arith.constant 0 : i32
    return %c0_i32, %arg1 : i32, i32
  }
  func.func @transform_6(%arg0: i32, %arg1: i32) -> (i32, i32) {
    %c0_i32 = arith.constant 0 : i32
    %c0_i32_0 = arith.constant 0 : i32
    return %c0_i32, %arg1 : i32, i32
  }
  func.func @transform_7(%arg0: i32, %arg1: i32) -> (i32, i32) {
    %c0_i32 = arith.constant 0 : i32
    return %arg0, %arg1 : i32, i32
  }
}

</mosaic_0001>

<llo_original>
// kernel: tpu_custom_call.1
$region0: #{tpu_custom_call.1}
  #allocation0 [shape = 'u32[]', space=smem, size = 0x4, offset = 0x4, fixed_abs, tag = 'smem constant byte address 0x4 - core index']
  #allocation1 [shape = 'u32[144,128]{1,0:T(1,128)}', space=vmem, size = 0x12000, scoped, tag = 'internal scratch']
  #allocation2 [shape = 'f32[8,256]{1,0:T(8,128)}', space=vmem, size = 0x2000, scoped, tag = 'scratch operand']
  %s0 = inlined_call_operand.vmem [shape: f32[8,1], index: 0, kind: input, shape index: {}]
  %s1 = inlined_call_operand.vmem [shape: f32[1,64], index: 1, kind: input, shape index: {}]
  %s2 = inlined_call_operand.vmem [shape: f32[1,64], index: 2, kind: input, shape index: {}]
  %s3 = inlined_call_operand.hbm [shape: bf16[64,256], index: 3, kind: input, shape index: {}]
  %s4 = inlined_call_operand.vmem [shape: f32[1,256], index: 4, kind: input, shape index: {}]
  %s5 = inlined_call_operand.hbm [shape: bf16[256,256], index: 5, kind: input, shape index: {}]
  %s6 = inlined_call_operand.vmem [shape: f32[1,256], index: 6, kind: input, shape index: {}]
  %s7 = inlined_call_operand.hbm [shape: f32[8,256], index: 7, kind: output, shape index: {}]
  %s8 = sld [smem:[#allocation0]]
  $region50: #{tpu_custom_call.1} parent=0
    _
  %s10 = ssub.s32 1, %s8
  %s11 = scalar_select 0, %s10, %s8
  $region1: #{tpu_custom_call.1} parent=0
    #allocation3 [shape = 'u8[32768]{0}', space=vmem, size = 0x8000, scoped, tag = 'input window, operand 3, single buffered']
    #allocation4 [shape = 's32[1]{0}', space=sflag, size = 0x4, scoped, tag = 'scoped memory for tpu_custom_call.1']
    #allocation5 [shape = 's32[1]{0}', space=sflag, size = 0x4, scoped, tag = 'scoped memory for tpu_custom_call.1']
    #allocation6 [shape = 'u8[131072]{0}', space=vmem, size = 0x20000, scoped, tag = 'input window, operand 5, single buffered']
    #allocation7 [shape = 's32[1]{0}', space=sflag, size = 0x4, scoped, tag = 'scoped memory for tpu_custom_call.1']
    #allocation8 [shape = 'u8[8192]{0}', space=vmem, size = 0x2000, scoped, tag = 'output window, operand 0, single buffered']
    %12 = vsyncpa [#allocation4], 0
    %13 = vsyncpa [#allocation7], 0
    %14 = vsyncpa [#allocation5], 0
    // Predicated region
    $region2: #{tpu_custom_call.1} parent=1 // pred_check
      _
    $region3: #{tpu_custom_call.1} parent=1 // pred_check_branch
      %16 = sbr.rel (0) target = $region5
    $region4: #{tpu_custom_call.1} parent=1 // pred_region
      _
    $region5: #{tpu_custom_call.1} parent=1 // pred_fallthru
      _
    // Predicated region
    $region6: #{tpu_custom_call.1} parent=1 // pred_check
      _
    $region7: #{tpu_custom_call.1} parent=1 // pred_check_branch
      %18 = sbr.rel (0) target = $region9
    $region8: #{tpu_custom_call.1} parent=1 // pred_region
      _
    $region9: #{tpu_custom_call.1} parent=1 // pred_fallthru
      _
    // Predicated region
    $region10: #{tpu_custom_call.1} parent=1 // pred_check
      _
    $region11: #{tpu_custom_call.1} parent=1 // pred_check_branch
      %20 = sbr.rel (0) target = $region13
    $region12: #{tpu_custom_call.1} parent=1 // pred_region
      _
    $region13: #{tpu_custom_call.1} parent=1 // pred_fallthru
      _
    // Predicated region
    $region14: #{tpu_custom_call.1} parent=1 // pred_check
      _
    $region15: #{tpu_custom_call.1} parent=1 // pred_check_branch
      %22 = sbr.rel (0) target = $region17
    $region16: #{tpu_custom_call.1} parent=1 // pred_region
      %s24 = ssub.s32 1024, 1024
      %25 = vsyncadd [#allocation4], %s24
      %s26 = sshll.u32 [#allocation3], 4
      %s27 = int_to_ptr.vmem [resolvable:$true] %s26
      %32 = dma.hbm_to_vmem [thread:$0]  %s3, 1024, %s27, [#allocation4], 128, 128, 8
    $region17: #{tpu_custom_call.1} parent=1 // pred_fallthru
      _
    // Predicated region
    $region18: #{tpu_custom_call.1} parent=1 // pred_check
      _
    $region19: #{tpu_custom_call.1} parent=1 // pred_check_branch
      %34 = sbr.rel (0) target = $region21
    $region20: #{tpu_custom_call.1} parent=1 // pred_region
      _
    $region21: #{tpu_custom_call.1} parent=1 // pred_fallthru
      _
    // Predicated region
    $region22: #{tpu_custom_call.1} parent=1 // pred_check
      _
    $region23: #{tpu_custom_call.1} parent=1 // pred_check_branch
      %36 = sbr.rel (0) target = $region25
    $region24: #{tpu_custom_call.1} parent=1 // pred_region
      %s38 = ssub.s32 4096, 4096
      %39 = vsyncadd [#allocation7], %s38
      %s40 = sshll.u32 [#allocation6], 4
      %s41 = int_to_ptr.vmem [resolvable:$true] %s40
      %46 = dma.hbm_to_vmem [thread:$0]  %s5, 4096, %s41, [#allocation7], 128, 128, 8
    $region25: #{tpu_custom_call.1} parent=1 // pred_fallthru
      _
    // Predicated region
    $region26: #{tpu_custom_call.1} parent=1 // pred_check
      _
    $region27: #{tpu_custom_call.1} parent=1 // pred_check_branch
      %48 = sbr.rel (0) target = $region29
    $region28: #{tpu_custom_call.1} parent=1 // pred_region
      _
    $region29: #{tpu_custom_call.1} parent=1 // pred_fallthru
      _
    // Predicated region
    $region30: #{tpu_custom_call.1} parent=1 // pred_check
      _
    $region31: #{tpu_custom_call.1} parent=1 // pred_check_branch
      %50 = sbr.rel (0) target = $region33
    $region32: #{tpu_custom_call.1} parent=1 // pred_region
      %51 = dma.done [#allocation4], 1024
    $region33: #{tpu_custom_call.1} parent=1 // pred_fallthru
      _
    // Predicated region
    $region34: #{tpu_custom_call.1} parent=1 // pred_check
      _
    $region35: #{tpu_custom_call.1} parent=1 // pred_check_branch
      %53 = sbr.rel (0) target = $region37
    $region36: #{tpu_custom_call.1} parent=1 // pred_region
      %54 = dma.done [#allocation7], 4096
    $region37: #{tpu_custom_call.1} parent=1 // pred_fallthru
      _
    %p56 = scmp.eq.s32.totalorder 0, 0
    // Predicated region
    $region38: #{tpu_custom_call.1} parent=1 // pred_check
      %p57 = pneg %p56
    $region39: #{tpu_custom_call.1} parent=1 // pred_check_branch
      %59 = sbr.rel (%p57) target = $region41
    $region40: #{tpu_custom_call.1} parent=1 // pred_region
      %v60 = vld [vmem:[%s0] sm:$0xff]
      %v61 = vld [vmem:[%s1] sm:$0x1]
      %63 = vset.pattern.permute.xlu0 0
      %64 = vperm.xlu0 %63, %v60
      %v65 = vpop.permute.xlu0 %64
      %v68 = vlaneseq
      %v69 = vshrl.u32 %v68, 7
      %v70 = vsub.s32 0, %v69
      %v71 = vrot.slane %v61, %v70
      %v73 = vmul.f32 %v65, %v71
      %v74 = vld [vmem:[%s2] sm:$0x1]
      %v76 = vlaneseq
      %v77 = vshrl.u32 %v76, 7
      %v78 = vsub.s32 0, %v77
      %v79 = vrot.slane %v74, %v78
      %v81 = vadd.f32 %v73, %v79
      %vm82 = vcmp.gt.f32.partialorder %v81, 0.0
      %v83 = vmul.f32 %v81, 0.2
      %v84 = vsel %vm82, %v81, %v83
      %v85 = vpack.c.bf16 %v84, %v84
      %v86 = vld [vmem:[#allocation3] sm:$0xff]
      %v87 = vld [vmem:[#allocation3 + $0x8] sm:$0xff]
      %v88 = vld [vmem:[#allocation3 + $0x10] sm:$0xff]
      %v89 = vld [vmem:[#allocation3 + $0x18] sm:$0xff]
      %v90 = vld [vmem:[#allocation3 + $0x20] sm:$0xff]
      %v91 = vld [vmem:[#allocation3 + $0x28] sm:$0xff]
      %v92 = vld [vmem:[#allocation3 + $0x30] sm:$0xff]
      %v93 = vld [vmem:[#allocation3 + $0x38] sm:$0xff]
      %v94 = vld [vmem:[%s4] sm:$0x3]
      %v96 = vlaneseq
      %v97 = vshrl.u32 %v96, 7
      %v98 = vsub.s32 0, %v97
      %v99 = vrot.slane %v94, %v98
      %v100 = vlaneseq
      %v101 = vshrl.u32 %v100, 7
      %v102 = vsub.s32 1, %v101
      %v103 = vrot.slane %v94, %v102
      %v114 = vunpack.c.l.b16 %v86
      %v115 = vunpack.c.h.b16 %v86
      %v116 = vunpack.c.l.b16 %v87
      %v117 = vunpack.c.h.b16 %v87
      %v118 = vunpack.c.l.b16 %v88
      %v119 = vunpack.c.h.b16 %v88
      %v120 = vunpack.c.l.b16 %v89
      %v121 = vunpack.c.h.b16 %v89
      %v122 = vunpack.c.l.b16 %v90
      %v123 = vunpack.c.h.b16 %v90
      %v124 = vunpack.c.l.b16 %v91
      %v125 = vunpack.c.h.b16 %v91
      %v126 = vunpack.c.l.b16 %v92
      %v127 = vunpack.c.h.b16 %v92
      %v128 = vunpack.c.l.b16 %v93
      %v129 = vunpack.c.h.b16 %v93
      %v130 = vpack.c.b16 %v116, %v114
      %v131 = vpack.c.b16 %v117, %v115
      %v132 = vpack.c.b16 %v120, %v118
      %v133 = vpack.c.b16 %v121, %v119
      %v134 = vpack.c.b16 %v124, %v122
      %v135 = vpack.c.b16 %v125, %v123
      %v136 = vpack.c.b16 %v128, %v126
      %v137 = vpack.c.b16 %v129, %v127
      %vm146 = vcmask 523264
      %v148 = vsel %vm146, %v85, 0
      %150 = vmatprep.subr.bf16.mxu0 %v131
      %151 = vmatpush1.bf16.msra.mxu0 %v130
      %152 = vmatprep.subr.bf16.mxu0 %v133
      %153 = vmatpush1.bf16.msra.mxu0 %v132
      %154 = vmatprep.subr.bf16.mxu0 %v135
      %155 = vmatpush1.bf16.msra.mxu0 %v134
      %156 = vmatprep.subr.bf16.mxu0 %v137
      %157 = vmatpush1.bf16.msra.mxu0 %v136
      %158 = vmatprep.subr.bf16.mxu0 0
      %159 = vmatpush1.bf16.msra.mxu0 0
      %160 = vmatprep.subr.bf16.mxu0 0
      %161 = vmatpush1.bf16.msra.mxu0 0
      %162 = vmatprep.subr.bf16.mxu0 0
      %163 = vmatpush1.bf16.msra.mxu0 0
      %164 = vmatprep.subr.bf16.mxu0 0
      %165 = vmatpush1.bf16.msra.mxu0 0
      %166 = vmatprep.subr.bf16.mxu0 0
      %167 = vmatpush1.bf16.msra.mxu0 0
      %168 = vmatprep.subr.bf16.mxu0 0
      %169 = vmatpush1.bf16.msra.mxu0 0
      %170 = vmatprep.subr.bf16.mxu0 0
      %171 = vmatpush1.bf16.msra.mxu0 0
      %172 = vmatprep.subr.bf16.mxu0 0
      %173 = vmatpush1.bf16.msra.mxu0 0
      %174 = vmatprep.subr.bf16.mxu0 0
      %175 = vmatpush1.bf16.msra.mxu0 0
      %176 = vmatprep.subr.bf16.mxu0 0
      %177 = vmatpush1.bf16.msra.mxu0 0
      %178 = vmatprep.subr.bf16.mxu0 0
      %179 = vmatpush1.bf16.msra.mxu0 0
      %180 = vmatprep.subr.bf16.mxu0 0
      %181 = vmatpush1.bf16.msra.mxu0 0
      %182 = vmatprep.mubr.bf16.mxu0 0
      %183 = vmatmul.mubr.bf16.gmra.mrb[0].mxu0 %v148
      %v184 = vpop.f32.mrb[0].mxu0
      %v185 = vadd.f32 %v99, %v184
      %v186 = vpop.f32.mrb[0].mxu0
      %v187 = vadd.f32 %v103, %v186
      %v188 = vpop.f32.mrb[0].mxu0
      %v189 = vpop.f32.mrb[0].mxu0
      %190 = vdwg.mxu0
      %vm191 = vcmp.gt.f32.partialorder %v185, 0.0
      %vm192 = vcmp.gt.f32.partialorder %v187, 0.0
      %v193 = vmul.f32 %v185, 0.2
      %v194 = vmul.f32 %v187, 0.2
      %v195 = vsel %vm191, %v185, %v193
      %v196 = vsel %vm192, %v187, %v194
      %197 = vst [vmem:[#allocation2] sm:$0xff] %v195
      %198 = vst [vmem:[#allocation2 + $0x8] sm:$0xff] %v196
    $region41: #{tpu_custom_call.1} parent=1 // pred_fallthru
      _
    %v199 = vld [vmem:[#allocation2] sm:$0xff]
    %v200 = vld [vmem:[#allocation2 + $0x8] sm:$0xff]
    %v201 = vpack.c.bf16 %v199, %v199
    %v202 = vpack.c.bf16 %v200, %v200
    %v203 = vld [vmem:[#allocation6] sm:$0xff]
    %v204 = vld [vmem:[#allocation6 + $0x8] sm:$0xff]
    %v205 = vld [vmem:[#allocation6 + $0x10] sm:$0xff]
    %v206 = vld [vmem:[#allocation6 + $0x18] sm:$0xff]
    %v207 = vld [vmem:[#allocation6 + $0x20] sm:$0xff]
    %v208 = vld [vmem:[#allocation6 + $0x28] sm:$0xff]
    %v209 = vld [vmem:[#allocation6 + $0x30] sm:$0xff]
    %v210 = vld [vmem:[#allocation6 + $0x38] sm:$0xff]
    %v211 = vld [vmem:[#allocation6 + $0x40] sm:$0xff]
    %v212 = vld [vmem:[#allocation6 + $0x48] sm:$0xff]
    %v213 = vld [vmem:[#allocation6 + $0x50] sm:$0xff]
    %v214 = vld [vmem:[#allocation6 + $0x58] sm:$0xff]
    %v215 = vld [vmem:[#allocation6 + $0x60] sm:$0xff]
    %v216 = vld [vmem:[#allocation6 + $0x68] sm:$0xff]
    %v217 = vld [vmem:[#allocation6 + $0x70] sm:$0xff]
    %v218 = vld [vmem:[#allocation6 + $0x78] sm:$0xff]
    %v219 = vld [vmem:[#allocation6 + $0x80] sm:$0xff]
    %v220 = vld [vmem:[#allocation6 + $0x88] sm:$0xff]
    %v221 = vld [vmem:[#allocation6 + $0x90] sm:$0xff]
    %v222 = vld [vmem:[#allocation6 + $0x98] sm:$0xff]
    %v223 = vld [vmem:[#allocation6 + $0xa0] sm:$0xff]
    %v224 = vld [vmem:[#allocation6 + $0xa8] sm:$0xff]
    %v225 = vld [vmem:[#allocation6 + $0xb0] sm:$0xff]
    %v226 = vld [vmem:[#allocation6 + $0xb8] sm:$0xff]
    %v227 = vld [vmem:[#allocation6 + $0xc0] sm:$0xff]
    %v228 = vld [vmem:[#allocation6 + $0xc8] sm:$0xff]
    %v229 = vld [vmem:[#allocation6 + $0xd0] sm:$0xff]
    %v230 = vld [vmem:[#allocation6 + $0xd8] sm:$0xff]
    %v231 = vld [vmem:[#allocation6 + $0xe0] sm:$0xff]
    %v232 = vld [vmem:[#allocation6 + $0xe8] sm:$0xff]
    %v233 = vld [vmem:[#allocation6 + $0xf0] sm:$0xff]
    %v234 = vld [vmem:[#allocation6 + $0xf8] sm:$0xff]
    %v235 = vld [vmem:[%s6] sm:$0x3]
    %v237 = vlaneseq
    %v238 = vshrl.u32 %v237, 7
    %v239 = vsub.s32 0, %v238
    %v240 = vrot.slane %v235, %v239
    %v241 = vlaneseq
    %v242 = vshrl.u32 %v241, 7
    %v243 = vsub.s32 1, %v242
    %v244 = vrot.slane %v235, %v243
    %v279 = vunpack.c.l.b16 %v203
    %v280 = vunpack.c.h.b16 %v203
    %v281 = vunpack.c.l.b16 %v204
    %v282 = vunpack.c.h.b16 %v204
    %v283 = vunpack.c.l.b16 %v205
    %v284 = vunpack.c.h.b16 %v205
    %v285 = vunpack.c.l.b16 %v206
    %v286 = vunpack.c.h.b16 %v206
    %v287 = vunpack.c.l.b16 %v207
    %v288 = vunpack.c.h.b16 %v207
    %v289 = vunpack.c.l.b16 %v208
    %v290 = vunpack.c.h.b16 %v208
    %v291 = vunpack.c.l.b16 %v209
    %v292 = vunpack.c.h.b16 %v209
    %v293 = vunpack.c.l.b16 %v210
    %v294 = vunpack.c.h.b16 %v210
    %v295 = vunpack.c.l.b16 %v211
    %v296 = vunpack.c.h.b16 %v211
    %v297 = vunpack.c.l.b16 %v212
    %v298 = vunpack.c.h.b16 %v212
    %v299 = vunpack.c.l.b16 %v213
    %v300 = vunpack.c.h.b16 %v213
    %v301 = vunpack.c.l.b16 %v214
    %v302 = vunpack.c.h.b16 %v214
    %v303 = vunpack.c.l.b16 %v215
    %v304 = vunpack.c.h.b16 %v215
    %v305 = vunpack.c.l.b16 %v216
    %v306 = vunpack.c.h.b16 %v216
    %v307 = vunpack.c.l.b16 %v217
    %v308 = vunpack.c.h.b16 %v217
    %v309 = vunpack.c.l.b16 %v218
    %v310 = vunpack.c.h.b16 %v218
    %v311 = vunpack.c.l.b16 %v219
    %v312 = vunpack.c.h.b16 %v219
    %v313 = vunpack.c.l.b16 %v220
    %v314 = vunpack.c.h.b16 %v220
    %v315 = vunpack.c.l.b16 %v221
    %v316 = vunpack.c.h.b16 %v221
    %v317 = vunpack.c.l.b16 %v222
    %v318 = vunpack.c.h.b16 %v222
    %v319 = vunpack.c.l.b16 %v223
    %v320 = vunpack.c.h.b16 %v223
    %v321 = vunpack.c.l.b16 %v224
    %v322 = vunpack.c.h.b16 %v224
    %v323 = vunpack.c.l.b16 %v225
    %v324 = vunpack.c.h.b16 %v225
    %v325 = vunpack.c.l.b16 %v226
    %v326 = vunpack.c.h.b16 %v226
    %v327 = vunpack.c.l.b16 %v227
    %v328 = vunpack.c.h.b16 %v227
    %v329 = vunpack.c.l.b16 %v228
    %v330 = vunpack.c.h.b16 %v228
    %v331 = vunpack.c.l.b16 %v229
    %v332 = vunpack.c.h.b16 %v229
    %v333 = vunpack.c.l.b16 %v230
    %v334 = vunpack.c.h.b16 %v230
    %v335 = vunpack.c.l.b16 %v231
    %v336 = vunpack.c.h.b16 %v231
    %v337 = vunpack.c.l.b16 %v232
    %v338 = vunpack.c.h.b16 %v232
    %v339 = vunpack.c.l.b16 %v233
    %v340 = vunpack.c.h.b16 %v233
    %v341 = vunpack.c.l.b16 %v234
    %v342 = vunpack.c.h.b16 %v234
    %v343 = vpack.c.b16 %v281, %v279
    %v344 = vpack.c.b16 %v282, %v280
    %v345 = vpack.c.b16 %v285, %v283
    %v346 = vpack.c.b16 %v286, %v284
    %v347 = vpack.c.b16 %v289, %v287
    %v348 = vpack.c.b16 %v290, %v288
    %v349 = vpack.c.b16 %v293, %v291
    %v350 = vpack.c.b16 %v294, %v292
    %v351 = vpack.c.b16 %v297, %v295
    %v352 = vpack.c.b16 %v298, %v296
    %v353 = vpack.c.b16 %v301, %v299
    %v354 = vpack.c.b16 %v302, %v300
    %v355 = vpack.c.b16 %v305, %v303
    %v356 = vpack.c.b16 %v306, %v304
    %v357 = vpack.c.b16 %v309, %v307
    %v358 = vpack.c.b16 %v310, %v308
    %v359 = vpack.c.b16 %v313, %v311
    %v360 = vpack.c.b16 %v314, %v312
    %v361 = vpack.c.b16 %v317, %v315
    %v362 = vpack.c.b16 %v318, %v316
    %v363 = vpack.c.b16 %v321, %v319
    %v364 = vpack.c.b16 %v322, %v320
    %v365 = vpack.c.b16 %v325, %v323
    %v366 = vpack.c.b16 %v326, %v324
    %v367 = vpack.c.b16 %v329, %v327
    %v368 = vpack.c.b16 %v330, %v328
    %v369 = vpack.c.b16 %v333, %v331
    %v370 = vpack.c.b16 %v334, %v332
    %v371 = vpack.c.b16 %v337, %v335
    %v372 = vpack.c.b16 %v338, %v336
    %v373 = vpack.c.b16 %v341, %v339
    %v374 = vpack.c.b16 %v342, %v340
    %407 = vmatprep.subr.bf16.mxu0 %v344
    %408 = vmatpush1.bf16.msra.mxu0 %v343
    %409 = vmatprep.subr.bf16.mxu0 %v346
    %410 = vmatpush1.bf16.msra.mxu0 %v345
    %411 = vmatprep.subr.bf16.mxu0 %v348
    %412 = vmatpush1.bf16.msra.mxu0 %v347
    %413 = vmatprep.subr.bf16.mxu0 %v350
    %414 = vmatpush1.bf16.msra.mxu0 %v349
    %415 = vmatprep.subr.bf16.mxu0 %v352
    %416 = vmatpush1.bf16.msra.mxu0 %v351
    %417 = vmatprep.subr.bf16.mxu0 %v354
    %418 = vmatpush1.bf16.msra.mxu0 %v353
    %419 = vmatprep.subr.bf16.mxu0 %v356
    %420 = vmatpush1.bf16.msra.mxu0 %v355
    %421 = vmatprep.subr.bf16.mxu0 %v358
    %422 = vmatpush1.bf16.msra.mxu0 %v357
    %423 = vmatprep.subr.bf16.mxu0 %v360
    %424 = vmatpush1.bf16.msra.mxu0 %v359
    %425 = vmatprep.subr.bf16.mxu0 %v362
    %426 = vmatpush1.bf16.msra.mxu0 %v361
    %427 = vmatprep.subr.bf16.mxu0 %v364
    %428 = vmatpush1.bf16.msra.mxu0 %v363
    %429 = vmatprep.subr.bf16.mxu0 %v366
    %430 = vmatpush1.bf16.msra.mxu0 %v365
    %431 = vmatprep.subr.bf16.mxu0 %v368
    %432 = vmatpush1.bf16.msra.mxu0 %v367
    %433 = vmatprep.subr.bf16.mxu0 %v370
    %434 = vmatpush1.bf16.msra.mxu0 %v369
    %435 = vmatprep.subr.bf16.mxu0 %v372
    %436 = vmatpush1.bf16.msra.mxu0 %v371
    %437 = vmatprep.subr.bf16.mxu0 %v374
    %438 = vmatpush1.bf16.msra.mxu0 %v373
    %439 = vmatprep.mubr.bf16.mxu0 %v202
    %440 = vmatmul.mubr.bf16.gmra.mrb[0].mxu0 %v201
    %v441 = vpop.f32.mrb[0].mxu0
    %v442 = vadd.f32 %v240, %v441
    %v443 = vpop.f32.mrb[0].mxu0
    %v444 = vadd.f32 %v244, %v443
    %v445 = vpop.f32.mrb[0].mxu0
    %v446 = vpop.f32.mrb[0].mxu0
    %447 = vdwg.mxu0
    %448 = vst [vmem:[#allocation8] sm:$0xff] %v442
    %449 = vst [vmem:[#allocation8 + $0x8] sm:$0xff] %v444
    // Predicated region
    $region42: #{tpu_custom_call.1} parent=1 // pred_check
      _
    $region43: #{tpu_custom_call.1} parent=1 // pred_check_branch
      %451 = sbr.rel (0) target = $region45
    $region44: #{tpu_custom_call.1} parent=1 // pred_region
      %s453 = ssub.s32 256, 256
      %454 = vsyncadd [#allocation5], %s453
      %s456 = sshll.u32 [#allocation8], 4
      %s457 = int_to_ptr.vmem [resolvable:$true] %s456
      %459 = dma.vmem_to_hbm [thread:$0]  %s457, 256, %s7, [#allocation5]
    $region45: #{tpu_custom_call.1} parent=1 // pred_fallthru
      _
    // Predicated region
    $region46: #{tpu_custom_call.1} parent=1 // pred_check
      _
    $region47: #{tpu_custom_call.1} parent=1 // pred_check_branch
      %461 = sbr.rel (0) target = $region49
    $region48: #{tpu_custom_call.1} parent=1 // pred_region
      %462 = dma.done [#allocation5], 256
    $region49: #{tpu_custom_call.1} parent=1 // pred_fallthru
      _
    %463 = vsyncpa [#allocation4], 1
    %464 = vsyncpa [#allocation7], 1
    %465 = vsyncpa [#allocation5], 1

</llo_original>
